<compile_context>
chip_gen: v6e
topology: v6e:2x2x1
jax: 0.10.0
libtpu: 0.0.40
codegen_flags: <defaults>
</compile_context>

<pallas_src>
import jax
import jax.numpy as jnp
import numpy as np
from jax.experimental import pallas as pl
from jax.experimental.pallas import tpu as pltpu


# ----------------------------------------------------------------------------
# Pallas kernel: fused ConvMlp over a (Cin, pix_tile) slab of pixels
# ----------------------------------------------------------------------------
def _conv_mlp_kernel(x_ref, w1_ref, b1_ref, w2_ref, b2_ref, o_ref):
    # x_ref : (Cin,  pix_tile) bf16   channels on sublanes, pixels on lanes
    # w1_ref: (Hd,   Cin)      bf16   b1_ref: (Hd,   1) f32
    # w2_ref: (Cout, Hd)       bf16   b2_ref: (Cout, 1) f32
    # o_ref : (Cout, pix_tile) output dtype
    # fc1 (1x1 conv) -> ReLU -> fc2 (1x1 conv); norm=Identity, drop=0.0 are no-ops.
    h = jnp.dot(w1_ref[...], x_ref[...], preferred_element_type=jnp.float32)
    h = jnp.maximum(h + b1_ref[...], 0.0)                 # act_layer = nn.ReLU (default)
    y = jnp.dot(w2_ref[...], h.astype(jnp.bfloat16), preferred_element_type=jnp.float32)
    o_ref[...] = (y + b2_ref[...]).astype(o_ref.dtype)


# ----------------------------------------------------------------------------
# Wrapper: NCHW -> (N, Cin, H*W) view -> fused kernel -> NCHW
# ----------------------------------------------------------------------------
def conv_mlp_forward(x_nchw, params, *, max_pix_tile=2048):
    """params (torch conv weights squeezed): w1 (Hd,Cin), b1 (Hd,), w2 (Cout,Hd), b2 (Cout,)."""
    N, Cin, H, W = x_nchw.shape
    HW = H * W
    w1, b1, w2, b2 = params["w1"], params["b1"], params["w2"], params["b2"]
    Hd, Cout = w1.shape[0], w2.shape[0]

    # NCHW-native view (merges trailing dims only -> no transpose); bf16 at the
    # boundary halves the input DMA bytes and fuses with the reshape.
    x_in = x_nchw.reshape(N, Cin, HW).astype(jnp.bfloat16)
    w1_b = w1.astype(jnp.bfloat16)
    w2_b = w2.astype(jnp.bfloat16)
    b1_c = b1.reshape(Hd, 1).astype(jnp.float32)
    b2_c = b2.reshape(Cout, 1).astype(jnp.float32)

    # Pixel tile: lane-dense multiple of 128, large for big HW (per-step overhead
    # ~0.35us), but keep >= 2 total grid steps when possible so both v7x TCs work.
    if HW >= 128:
        blocks = min(HW // 128, max(1, max_pix_tile // 128))
        if N * pl.cdiv(HW, 128 * blocks) < 2 and blocks > 1:
            blocks = max(1, blocks // 2)
        pix_tile = 128 * blocks
    else:
        pix_tile = HW                      # single full-extent pixel block (legal)
    grid = (N, pl.cdiv(HW, pix_tile))

    # VMEM budget derived from the actual per-step buffers (+ generous headroom).
    out_itemsize = jnp.dtype(x_nchw.dtype).itemsize
    step_bytes = (
        2 * Cin * pix_tile * 2                       # x block, double-buffered, bf16
        + 2 * Cout * pix_tile * out_itemsize         # out block, double-buffered
        + 2 * 2 * (Hd * Cin + Cout * Hd)             # w1/w2 bf16 (tiny, default buffering)
        + 2 * 4 * (Hd + Cout)                        # b1/b2 f32
        + 4 * (Hd + Cout) * pix_tile                 # f32 intermediates h, y
    )
    vmem_limit = int(min(64 * 1024 * 1024, 4 * step_bytes + (8 << 20)))

    out = pl.pallas_call(
        _conv_mlp_kernel,
        out_shape=jax.ShapeDtypeStruct((N, Cout, HW), x_nchw.dtype),
        grid=grid,
        in_specs=[
            pl.BlockSpec((None, Cin, pix_tile), lambda n, p: (n, 0, p)),  # x slab
            pl.BlockSpec((Hd, Cin), lambda n, p: (0, 0)),                 # W1
            pl.BlockSpec((Hd, 1), lambda n, p: (0, 0)),                   # b1
            pl.BlockSpec((Cout, Hd), lambda n, p: (0, 0)),                # W2
            pl.BlockSpec((Cout, 1), lambda n, p: (0, 0)),                 # b2
        ],
        out_specs=pl.BlockSpec((None, Cout, pix_tile), lambda n, p: (n, 0, p)),
        compiler_params=pltpu.CompilerParams(
            dimension_semantics=("parallel", "parallel"),  # shard (N, pixel blocks) across TCs
            vmem_limit_bytes=vmem_limit,
        ),
    )(x_in, w1_b, b1_c, w2_b, b2_c)

    return out.reshape(N, Cout, H, W)


# ----------------------------------------------------------------------------
# Pure-JAX reference mirroring the kernel's bf16-operand / f32-accumulate path
# ----------------------------------------------------------------------------
def ref_forward(x_nchw, params):
    b16 = lambda a: a.astype(jnp.bfloat16).astype(jnp.float32)
    N, Cin, H, W = x_nchw.shape
    x = b16(x_nchw).reshape(N, Cin, H * W)
    h = jnp.einsum("oc,ncp->nop", b16(params["w1"]), x,
                   precision=jax.lax.Precision.HIGHEST)
    h = jnp.maximum(h + params["b1"][None, :, None], 0.0)
    y = jnp.einsum("oh,nhp->nop", b16(params["w2"]), b16(h),
                   precision=jax.lax.Precision.HIGHEST)
    y = y + params["b2"][None, :, None]
    return y.reshape(N, -1, H, W).astype(x_nchw.dtype)


# ----------------------------------------------------------------------------
if __name__ == "__main__":
    key = jax.random.PRNGKey(0)
    kx, k1, k2, k3, k4 = jax.random.split(key, 5)

    # small shapes consistent with ConvMlp: batch=2, in=4, hidden=32, out=in, 16x16
    N, Cin, H, W = 2, 4, 16, 16
    hidden = 32
    Cout = Cin                                      # out_features defaults to in_features

    x = jax.random.normal(kx, (N, Cin, H, W), jnp.float32)
    params = {
        # torch fc1.weight (hidden, Cin, 1, 1) squeezed -> (hidden, Cin); fc2 likewise
        "w1": 0.1 * jax.random.normal(k1, (hidden, Cin), jnp.float32),
        "b1": 0.1 * jax.random.normal(k2, (hidden,), jnp.float32),
        "w2": 0.1 * jax.random.normal(k3, (Cout, hidden), jnp.float32),
        "b2": 0.1 * jax.random.normal(k4, (Cout,), jnp.float32),
    }

    out = jax.block_until_ready(conv_mlp_forward(x, params))
    ref = jax.block_until_ready(ref_forward(x, params))

    assert out.shape == (N, Cout, H, W), out.shape
    np.testing.assert_allclose(np.asarray(out), np.asarray(ref), rtol=1e-3, atol=1e-3)

    # TODO(synk): nn.Dropout(drop) is only non-trivial in training mode with drop>0;
    # the module default (drop=0.0) makes it an identity, so it is omitted here.
    print("KERNEL_OK")
</pallas_src>

<mosaic_0001>
module attributes {stable_mosaic.version = 11 : i64} {
  func.func @_conv_mlp_kernel(%arg0: i32, %arg1: i32, %arg2: memref<1x4x256xbf16, #tpu.memory_space<vmem>>, %arg3: memref<32x4xbf16, #tpu.memory_space<vmem>>, %arg4: memref<32x1xf32, #tpu.memory_space<vmem>>, %arg5: memref<4x32xbf16, #tpu.memory_space<vmem>>, %arg6: memref<4x1xf32, #tpu.memory_space<vmem>>, %arg7: memref<1x4x256xf32, #tpu.memory_space<vmem>>) attributes {dimension_semantics = [#tpu.dimension_semantics<parallel>, #tpu.dimension_semantics<parallel>], iteration_bounds = array<i64: 2, 1>, scalar_prefetch = 0 : i64, scratch_operands = 0 : i64, tpu.core_type = #tpu.core_type<tc>, window_params = [{transform_indices = @transform_0, window_bounds = array<i64: 1, 4, 256>}, {pipeline_mode = #tpu.pipeline_mode<synchronous>, transform_indices = @transform_1, window_bounds = array<i64: 32, 4>}, {pipeline_mode = #tpu.pipeline_mode<synchronous>, transform_indices = @transform_2, window_bounds = array<i64: 32, 1>}, {pipeline_mode = #tpu.pipeline_mode<synchronous>, transform_indices = @transform_3, window_bounds = array<i64: 4, 32>}, {pipeline_mode = #tpu.pipeline_mode<synchronous>, transform_indices = @transform_4, window_bounds = array<i64: 4, 1>}, {transform_indices = @transform_5, window_bounds = array<i64: 1, 4, 256>}]} {
    %c0 = arith.constant 0 : index
    %c0_0 = arith.constant 0 : index
    %0 = vector.load %arg3[%c0, %c0_0] : memref<32x4xbf16, #tpu.memory_space<vmem>>, vector<32x4xbf16>
    %c0_1 = arith.constant 0 : index
    %c0_2 = arith.constant 0 : index
    %c0_3 = arith.constant 0 : index
    %1 = vector.load %arg2[%c0_1, %c0_2, %c0_3] : memref<1x4x256xbf16, #tpu.memory_space<vmem>>, vector<1x4x256xbf16>
    %2 = vector.shape_cast %1 : vector<1x4x256xbf16> to vector<4x256xbf16>
    %cst = arith.constant dense<0.000000e+00> : vector<32x256xf32>
    %3 = tpu.matmul %0, %2, %cst {dimension_numbers = #tpu.dot_dimension_numbers<[1], [0], [0], [1], [0, 0, 1, 1], [], []>} : vector<32x4xbf16>, vector<4x256xbf16>, vector<32x256xf32> -> vector<32x256xf32>
    %c0_4 = arith.constant 0 : index
    %c0_5 = arith.constant 0 : index
    %4 = vector.load %arg4[%c0_4, %c0_5] : memref<32x1xf32, #tpu.memory_space<vmem>>, vector<32x1xf32>
    %5 = vector.broadcast %4 : vector<32x1xf32> to vector<32x256xf32>
    %6 = arith.addf %3, %5 : vector<32x256xf32>
    %cst_6 = arith.constant 0.000000e+00 : f32
    %7 = vector.broadcast %cst_6 : f32 to vector<32x256xf32>
    %8 = arith.maximumf %6, %7 : vector<32x256xf32>
    %c0_7 = arith.constant 0 : index
    %c0_8 = arith.constant 0 : index
    %9 = vector.load %arg5[%c0_7, %c0_8] : memref<4x32xbf16, #tpu.memory_space<vmem>>, vector<4x32xbf16>
    %10 = arith.truncf %8 : vector<32x256xf32> to vector<32x256xbf16>
    %cst_9 = arith.constant dense<0.000000e+00> : vector<4x256xf32>
    %11 = tpu.matmul %9, %10, %cst_9 {dimension_numbers = #tpu.dot_dimension_numbers<[1], [0], [0], [1], [0, 0, 1, 1], [], []>} : vector<4x32xbf16>, vector<32x256xbf16>, vector<4x256xf32> -> vector<4x256xf32>
    %c0_10 = arith.constant 0 : index
    %c0_11 = arith.constant 0 : index
    %12 = vector.load %arg6[%c0_10, %c0_11] : memref<4x1xf32, #tpu.memory_space<vmem>>, vector<4x1xf32>
    %13 = vector.broadcast %12 : vector<4x1xf32> to vector<4x256xf32>
    %14 = arith.addf %11, %13 : vector<4x256xf32>
    %c0_12 = arith.constant 0 : index
    %c0_13 = arith.constant 0 : index
    %c0_14 = arith.constant 0 : index
    %15 = vector.load %arg7[%c0_12, %c0_13, %c0_14] : memref<1x4x256xf32, #tpu.memory_space<vmem>>, vector<1x4x256xf32>
    %16 = vector.shape_cast %15 : vector<1x4x256xf32> to vector<4x256xf32>
    %17 = vector.shape_cast %14 : vector<4x256xf32> to vector<1x4x256xf32>
    tpu.vector_store %arg7[%c0_12, %c0_13, %c0_14], %17 {strides = array<i32>} : memref<1x4x256xf32, #tpu.memory_space<vmem>>, vector<1x4x256xf32>,
    return
  }
  func.func @transform_0(%arg0: i32, %arg1: i32) -> (i32, i32, i32) {
    %c0_i32 = arith.constant 0 : i32
    %c0_i32_0 = arith.constant 0 : i32
    return %arg0, %c0_i32, %arg1 : i32, i32, i32
  }
  func.func @transform_1(%arg0: i32, %arg1: i32) -> (i32, i32) {
    %c0_i32 = arith.constant 0 : i32
    %c0_i32_0 = arith.constant 0 : i32
    %c0_i32_1 = arith.constant 0 : i32
    return %c0_i32, %c0_i32_0 : i32, i32
  }
  func.func @transform_2(%arg0: i32, %arg1: i32) -> (i32, i32) {
    %c0_i32 = arith.constant 0 : i32
    %c0_i32_0 = arith.constant 0 : i32
    %c0_i32_1 = arith.constant 0 : i32
    return %c0_i32, %c0_i32_0 : i32, i32
  }
  func.func @transform_3(%arg0: i32, %arg1: i32) -> (i32, i32) {
    %c0_i32 = arith.constant 0 : i32
    %c0_i32_0 = arith.constant 0 : i32
    %c0_i32_1 = arith.constant 0 : i32
    return %c0_i32, %c0_i32_0 : i32, i32
  }
  func.func @transform_4(%arg0: i32, %arg1: i32) -> (i32, i32) {
    %c0_i32 = arith.constant 0 : i32
    %c0_i32_0 = arith.constant 0 : i32
    %c0_i32_1 = arith.constant 0 : i32
    return %c0_i32, %c0_i32_0 : i32, i32
  }
  func.func @transform_5(%arg0: i32, %arg1: i32) -> (i32, i32, i32) {
    %c0_i32 = arith.constant 0 : i32
    %c0_i32_0 = arith.constant 0 : i32
    return %arg0, %c0_i32, %arg1 : i32, i32, i32
  }
}

</mosaic_0001>

<llo_original>
// kernel: tpu_custom_call.1
$region0: #{tpu_custom_call.1}
  #allocation0 [shape = 'u32[]', space=smem, size = 0x4, offset = 0x4, fixed_abs, tag = 'smem constant byte address 0x4 - core index']
  #allocation1 [shape = 'u32[144,128]{1,0:T(1,128)}', space=vmem, size = 0x12000, scoped, tag = 'internal scratch']
  %s0 = inlined_call_operand.vmem [shape: bf16[2,4,256], index: 0, kind: input, shape index: {}]
  %s1 = inlined_call_operand.vmem [shape: bf16[32,4], index: 1, kind: input, shape index: {}]
  %s2 = inlined_call_operand.vmem [shape: f32[32,1], index: 2, kind: input, shape index: {}]
  %s3 = inlined_call_operand.vmem [shape: bf16[4,32], index: 3, kind: input, shape index: {}]
  %s4 = inlined_call_operand.vmem [shape: f32[4,1], index: 4, kind: input, shape index: {}]
  %s5 = inlined_call_operand.hbm [shape: f32[2,4,256], index: 5, kind: output, shape index: {}]
  %s6 = sld [smem:[#allocation0]]
  $region53: #{tpu_custom_call.1} parent=0
    _
  %s8 = ssub.s32 1, %s6
  %s9 = scalar_select 0, %s8, %s6
  $region1: #{tpu_custom_call.1} parent=0
    #allocation2 [shape = 'u8[8192]{0}', space=vmem, size = 0x2000, scoped, tag = 'output window, operand 0']
    #allocation3 [shape = 's32[2]{0}', space=sflag, size = 0x8, scoped, tag = 'scoped memory for tpu_custom_call.1']
    %10 = vsyncpa [#allocation3], 0
    %s11 = scalar_lea.sflag [#allocation3], 1
    %12 = vsyncpa %s11, 0
    loop: start=0, step=1, limit=4
    $region2: #{tpu_custom_call.1} parent=1 // loop_pre_header
      _
    $region3: #{tpu_custom_call.1} parent=1 // loop_header
      %s14 = sphi 0, %s18
      %p15 = scmp.ge.s32.totalorder %s14, 4
      %s21 = sphi 0, %s33
      %s22 = sphi 0, %s29
      %s23 = sphi 0, %s21
      %s24 = sphi 0, %s22
      %s25 = sphi 0, %s23
      %s26 = sphi 0, %s24
      %s38 = sphi 0, %s40
      %s41 = sphi 0, %s38
      %s42 = sphi 0, %s41
      %s58 = sphi 0, %s42
      %s62 = sphi 0, %s62
      %s64 = sphi 0, %s62
      %s65 = sphi 0, %s64
      %s79 = sphi 0, %s65
      %s83 = sphi 0, %s83
      %s85 = sphi 0, %s83
      %s86 = sphi 0, %s85
      %s100 = sphi 0, %s86
      %s104 = sphi 0, %s104
      %s106 = sphi 0, %s104
      %s107 = sphi 0, %s106
      %s121 = sphi 0, %s107
      %s125 = sphi 0, %s125
      %s127 = sphi 0, %s125
      %s128 = sphi 0, %s127
      %s142 = sphi 0, %s128
      %s150 = sphi 0, %s152
      %s153 = sphi 0, %s150
      %s154 = sphi 0, %s153
      %s170 = sphi 0, %s154
    $region4: #{tpu_custom_call.1} parent=1 // loop_header_branch
      %17 = sbr.rel (%p15) target = $region8
    $region5: #{tpu_custom_call.1} parent=1 // loop_body
      %s19 = ssub.s32 %s14, 1
      %s20 = ssub.s32 %s14, 2
      %s27 = sadd.s32 1, %s22
      %p28 = scmp.ge.s32.totalorder %s27, 1
      %s29 = scalar_select %p28, 0, %s27
      %s30 = sadd.s32 1, %s21
      %s31 = scalar_select %p28, %s30, %s21
      %p32 = scmp.ge.s32.totalorder %s31, 2
      %s33 = scalar_select %p32, 0, %s31
      %s34 = ssub.s32 %s21, %s33
      %s35 = ssub.s32 %s22, %s29
      %s36 = sor.u32 %s34, %s35
      %p37 = scmp.eq.s32.totalorder %s36, 0
      %s39 = sadd.s32 %s38, 1
      %s40 = scalar_select %p37, %s38, %s39
      %p43 = pneg %p37
      %p44 = scmp.eq.s32.totalorder %s14, 1
      %p45 = por %p43, %p44
      %p46 = scmp.ne.s32.totalorder %s38, %s41
      %p47 = scmp.eq.s32.totalorder %s14, 0
      %p48 = por %p46, %p47
      %p49 = scmp.ne.s32.totalorder %s38, %s41
      %p50 = scmp.eq.s32.totalorder %s19, 1
      %p51 = por %p49, %p50
      %p52 = scmp.ne.s32.totalorder %s41, %s42
      %p53 = scmp.eq.s32.totalorder %s19, 0
      %p54 = por %p52, %p53
      %p55 = scmp.ne.s32.totalorder %s41, %s42
      %p56 = scmp.eq.s32.totalorder %s20, 1
      %p57 = por %p55, %p56
      %p59 = scmp.ne.s32.totalorder %s42, %s58
      %p60 = scmp.eq.s32.totalorder %s20, 0
      %p61 = por %p59, %p60
      %s63 = sadd.s32 %s62, 1
      %p66 = scmp.eq.s32.totalorder %s14, 1
      %p67 = scmp.ne.s32.totalorder %s62, %s64
      %p68 = scmp.eq.s32.totalorder %s14, 0
      %p69 = por %p67, %p68
      %p70 = scmp.ne.s32.totalorder %s62, %s64
      %p71 = scmp.eq.s32.totalorder %s19, 1
      %p72 = por %p70, %p71
      %p73 = scmp.ne.s32.totalorder %s64, %s65
      %p74 = scmp.eq.s32.totalorder %s19, 0
      %p75 = por %p73, %p74
      %p76 = scmp.ne.s32.totalorder %s64, %s65
      %p77 = scmp.eq.s32.totalorder %s20, 1
      %p78 = por %p76, %p77
      %p80 = scmp.ne.s32.totalorder %s65, %s79
      %p81 = scmp.eq.s32.totalorder %s20, 0
      %p82 = por %p80, %p81
      %s84 = sadd.s32 %s83, 1
      %p87 = scmp.eq.s32.totalorder %s14, 1
      %p88 = scmp.ne.s32.totalorder %s83, %s85
      %p89 = scmp.eq.s32.totalorder %s14, 0
      %p90 = por %p88, %p89
      %p91 = scmp.ne.s32.totalorder %s83, %s85
      %p92 = scmp.eq.s32.totalorder %s19, 1
      %p93 = por %p91, %p92
      %p94 = scmp.ne.s32.totalorder %s85, %s86
      %p95 = scmp.eq.s32.totalorder %s19, 0
      %p96 = por %p94, %p95
      %p97 = scmp.ne.s32.totalorder %s85, %s86
      %p98 = scmp.eq.s32.totalorder %s20, 1
      %p99 = por %p97, %p98
      %p101 = scmp.ne.s32.totalorder %s86, %s100
      %p102 = scmp.eq.s32.totalorder %s20, 0
      %p103 = por %p101, %p102
      %s105 = sadd.s32 %s104, 1
      %p108 = scmp.eq.s32.totalorder %s14, 1
      %p109 = scmp.ne.s32.totalorder %s104, %s106
      %p110 = scmp.eq.s32.totalorder %s14, 0
      %p111 = por %p109, %p110
      %p112 = scmp.ne.s32.totalorder %s104, %s106
      %p113 = scmp.eq.s32.totalorder %s19, 1
      %p114 = por %p112, %p113
      %p115 = scmp.ne.s32.totalorder %s106, %s107
      %p116 = scmp.eq.s32.totalorder %s19, 0
      %p117 = por %p115, %p116
      %p118 = scmp.ne.s32.totalorder %s106, %s107
      %p119 = scmp.eq.s32.totalorder %s20, 1
      %p120 = por %p118, %p119
      %p122 = scmp.ne.s32.totalorder %s107, %s121
      %p123 = scmp.eq.s32.totalorder %s20, 0
      %p124 = por %p122, %p123
      %s126 = sadd.s32 %s125, 1
      %p129 = scmp.eq.s32.totalorder %s14, 1
      %p130 = scmp.ne.s32.totalorder %s125, %s127
      %p131 = scmp.eq.s32.totalorder %s14, 0
      %p132 = por %p130, %p131
      %p133 = scmp.ne.s32.totalorder %s125, %s127
      %p134 = scmp.eq.s32.totalorder %s19, 1
      %p135 = por %p133, %p134
      %p136 = scmp.ne.s32.totalorder %s127, %s128
      %p137 = scmp.eq.s32.totalorder %s19, 0
      %p138 = por %p136, %p137
      %p139 = scmp.ne.s32.totalorder %s127, %s128
      %p140 = scmp.eq.s32.totalorder %s20, 1
      %p141 = por %p139, %p140
      %p143 = scmp.ne.s32.totalorder %s128, %s142
      %p144 = scmp.eq.s32.totalorder %s20, 0
      %p145 = por %p143, %p144
      %s146 = ssub.s32 %s21, %s33
      %s147 = ssub.s32 %s22, %s29
      %s148 = sor.u32 %s146, %s147
      %p149 = scmp.eq.s32.totalorder %s148, 0
      %s151 = sadd.s32 %s150, 1
      %s152 = scalar_select %p149, %s150, %s151
      %p155 = pneg %p149
      %p156 = scmp.eq.s32.totalorder %s14, 1
      %p157 = por %p155, %p156
      %p158 = scmp.ne.s32.totalorder %s150, %s153
      %p159 = scmp.eq.s32.totalorder %s14, 0
      %p160 = por %p158, %p159
      %p161 = scmp.ne.s32.totalorder %s150, %s153
      %p162 = scmp.eq.s32.totalorder %s19, 1
      %p163 = por %p161, %p162
      %p164 = scmp.ne.s32.totalorder %s153, %s154
      %p165 = scmp.eq.s32.totalorder %s19, 0
      %p166 = por %p164, %p165
      %p167 = scmp.ne.s32.totalorder %s153, %s154
      %p168 = scmp.eq.s32.totalorder %s20, 1
      %p169 = por %p167, %p168
      %p171 = scmp.ne.s32.totalorder %s154, %s170
      %p172 = scmp.eq.s32.totalorder %s20, 0
      %p173 = por %p171, %p172
      %p174 = scmp.le.s32.totalorder 1, %s14
      %p175 = scmp.lt.s32.totalorder %s14, 3
      %p176 = pnand %p174, %p175
      %p177 = pneg %p176
      // Predicated region
      $region9: #{tpu_custom_call.1} parent=5 // pred_check
        _
      $region10: #{tpu_custom_call.1} parent=5 // pred_check_branch
        %179 = sbr.rel (%p176) target = $region12
      $region11: #{tpu_custom_call.1} parent=5 // pred_region
        %s180 = ssub.s32 %s14, 1
        // Predicated region
        $region13: #{tpu_custom_call.1} parent=11 // pred_check
          %p181 = pneg %p75
        $region14: #{tpu_custom_call.1} parent=11 // pred_check_branch
          %183 = sbr.rel (%p181) target = $region16
        $region15: #{tpu_custom_call.1} parent=11 // pred_region
          _
        $region16: #{tpu_custom_call.1} parent=11 // pred_fallthru
          _
        // Predicated region
        $region17: #{tpu_custom_call.1} parent=11 // pred_check
          %p184 = pneg %p96
        $region18: #{tpu_custom_call.1} parent=11 // pred_check_branch
          %186 = sbr.rel (%p184) target = $region20
        $region19: #{tpu_custom_call.1} parent=11 // pred_region
          _
        $region20: #{tpu_custom_call.1} parent=11 // pred_fallthru
          _
        // Predicated region
        $region21: #{tpu_custom_call.1} parent=11 // pred_check
          %p187 = pneg %p117
        $region22: #{tpu_custom_call.1} parent=11 // pred_check_branch
          %189 = sbr.rel (%p187) target = $region24
        $region23: #{tpu_custom_call.1} parent=11 // pred_region
          _
        $region24: #{tpu_custom_call.1} parent=11 // pred_fallthru
          _
        // Predicated region
        $region25: #{tpu_custom_call.1} parent=11 // pred_check
          %p190 = pneg %p138
        $region26: #{tpu_custom_call.1} parent=11 // pred_check_branch
          %192 = sbr.rel (%p190) target = $region28
        $region27: #{tpu_custom_call.1} parent=11 // pred_region
          _
        $region28: #{tpu_custom_call.1} parent=11 // pred_fallthru
          _
      $region12: #{tpu_custom_call.1} parent=5 // pred_fallthru
        _
      %p193 = scmp.lt.s32.totalorder %s14, 2
      // Predicated region
      $region29: #{tpu_custom_call.1} parent=5 // pred_check
        %p194 = pneg %p193
      $region30: #{tpu_custom_call.1} parent=5 // pred_check_branch
        %196 = sbr.rel (%p194) target = $region32
      $region31: #{tpu_custom_call.1} parent=5 // pred_region
        // Predicated region
        $region33: #{tpu_custom_call.1} parent=31 // pred_check
          %p197 = pneg %p48
        $region34: #{tpu_custom_call.1} parent=31 // pred_check_branch
          %199 = sbr.rel (%p197) target = $region36
        $region35: #{tpu_custom_call.1} parent=31 // pred_region
          %s200 = smul.u32 2, %s22
          %p201 = scmp.lt.s32.totalorder %s21, 1
          %s202 = scalar_select %p201, %s21, 1
          %p203 = scmp.lt.s32.totalorder %s200, 1
          %s204 = scalar_select %p203, %s200, 1
          %s205 = smul.addr %s202, 2
          %s206 = sadd.s32 %s204, %s205
          %s207 = smul.addr %s206, 2
          %s208 = scalar_lea.vmem %s0, %s207
          %s209 = smul.u32 2, %s22
        $region36: #{tpu_custom_call.1} parent=31 // pred_fallthru
          _
      $region32: #{tpu_custom_call.1} parent=5 // pred_fallthru
        _
      %p210 = scmp.le.s32.totalorder 1, %s14
      %p211 = scmp.lt.s32.totalorder %s14, 3
      %p212 = pnand %p210, %p211
      %p213 = pneg %p212
      // Predicated region
      $region37: #{tpu_custom_call.1} parent=5 // pred_check
        _
      $region38: #{tpu_custom_call.1} parent=5 // pred_check_branch
        %215 = sbr.rel (%p212) target = $region40
      $region39: #{tpu_custom_call.1} parent=5 // pred_region
        %s216 = ssub.s32 %s14, 1
        %s217 = smul.u32 2, %s24
        %p218 = scmp.lt.s32.totalorder %s23, 1
        %s219 = scalar_select %p218, %s23, 1
        %p220 = scmp.lt.s32.totalorder %s217, 1
        %s221 = scalar_select %p220, %s217, 1
        %s222 = smul.addr %s219, 2
        %s223 = sadd.s32 %s221, %s222
        %s224 = smul.addr %s223, 2
        %s225 = scalar_lea.vmem %s0, %s224
        %p226 = pneg %p54
        %p227 = pneg %p51
        %p228 = pneg %p75
        %p229 = pneg %p72
        %p230 = pneg %p96
        %p231 = pneg %p93
        %p232 = pneg %p117
        %p233 = pneg %p114
        %p234 = pneg %p138
        %p235 = pneg %p135
        %p236 = pneg %p166
        %p237 = pneg %p163
        %s238 = sand.u32 %s153, 1
        %s239 = scalar_lea.sflag [#allocation3], %s238
        %s240 = sand.u32 %s153, 1
        %s241 = smul.addr %s240, 8
        %s242 = scalar_lea.vmem [#allocation2], %s241
        %s243 = smul.u32 2, %s24
        %p244 = scmp.lt.s32.totalorder %s23, 1
        %s245 = scalar_select %p244, %s23, 1
        %p246 = scmp.lt.s32.totalorder %s243, 1
        %s247 = scalar_select %p246, %s243, 1
        %s248 = smul.addr %s245, 2
        %s249 = sadd.s32 %s247, %s248
        %s250 = smul.addr %s249, 2
        %s251 = scalar_lea.vmem %s0, %s250
        %s252 = smul.u32 2, %s24
        %s253 = smul.u32 2, %s24
        %v255 = vld [vmem:[%s1] sm:$0xf]
        %v256 = vld [vmem:[%s1 + $0x4] sm:$0xf]
        %v257 = vld [vmem:[%s1 + $0x8] sm:$0xf]
        %v258 = vld [vmem:[%s1 + $0xc] sm:$0xf]
        %v259 = vld [vmem:[%s251] sm:$0xf]
        %v260 = vld [vmem:[%s2] sm:$0xff]
        %v261 = vld [vmem:[%s2 + $0x8] sm:$0xff]
        %v262 = vld [vmem:[%s2 + $0x10] sm:$0xff]
        %v263 = vld [vmem:[%s2 + $0x18] sm:$0xff]
        %265 = vset.pattern.permute.xlu0 0
        %266 = vperm.xlu0 %265, %v260
        %v267 = vpop.permute.xlu0 %266
        %270 = vset.pattern.permute.xlu0 0
        %271 = vperm.xlu0 %270, %v261
        %v272 = vpop.permute.xlu0 %271
        %275 = vset.pattern.permute.xlu0 0
        %276 = vperm.xlu0 %275, %v262
        %v277 = vpop.permute.xlu0 %276
        %280 = vset.pattern.permute.xlu0 0
        %281 = vperm.xlu0 %280, %v263
        %v282 = vpop.permute.xlu0 %281
        %v288 = vunpack.c.l.b16 %v255
        %v289 = vunpack.c.l.b16 %v256
        %v290 = vunpack.c.l.b16 %v257
        %v291 = vunpack.c.l.b16 %v258
        %v292 = vpack.c.b16 %v289, %v288
        %v293 = vpack.c.b16 %v291, %v290
        %v296 = vunpack.c.l.s4 1983009808
        %v297 = vunpack.c.0.s8 %v296
        %v298 = vlaneseq
        %v299 = vshrl.u32 %v298, 7
        %v300 = vsub.s32 %v297, %v299
        %v301 = vrot.slane %v259, %v300
        %v302 = vcombine.high %v301, %v301
        %vm303 = vcmask 31744
        %v305 = vsel %vm303, %v292, 0
        %v308 = vsel %vm303, %v293, 0
        %vm310 = vcmask 1041408
        %v312 = vsel %vm310, %v301, 0
        %v315 = vsel %vm310, %v302, 0
        %317 = vmatprep.subr.bf16.mxu0 0
        %318 = vmatpush1.bf16.msra.mxu0 0
        %319 = vmatprep.subr.bf16.mxu0 0
        %320 = vmatpush1.bf16.msra.mxu0 0
        %321 = vmatprep.subr.bf16.mxu0 0
        %322 = vmatpush1.bf16.msra.mxu0 0
        %323 = vmatprep.subr.bf16.mxu0 0
        %324 = vmatpush1.bf16.msra.mxu0 0
        %325 = vmatprep.subr.bf16.mxu0 0
        %326 = vmatpush1.bf16.msra.mxu0 0
        %327 = vmatprep.subr.bf16.mxu0 0
        %328 = vmatpush1.bf16.msra.mxu0 0
        %329 = vmatprep.subr.bf16.mxu0 0
        %330 = vmatpush1.bf16.msra.mxu0 0
        %331 = vmatprep.subr.bf16.mxu0 %v315
        %332 = vmatpush1.bf16.msra.mxu0 %v312
        %333 = vmatprep.subr.bf16.mxu0 0
        %334 = vmatpush2.bf16.msra.mxu0 0
        %335 = vmatprep.subr.bf16.mxu0 0
        %336 = vmatpush2.bf16.msra.mxu0 0
        %337 = vmatprep.subr.bf16.mxu0 0
        %338 = vmatpush2.bf16.msra.mxu0 0
        %339 = vmatprep.subr.bf16.mxu0 0
        %340 = vmatpush2.bf16.msra.mxu0 0
        %341 = vmatprep.subr.bf16.mxu0 0
        %342 = vmatpush2.bf16.msra.mxu0 0
        %343 = vmatprep.subr.bf16.mxu0 0
        %344 = vmatpush2.bf16.msra.mxu0 0
        %345 = vmatprep.subr.bf16.mxu0 0
        %346 = vmatpush2.bf16.msra.mxu0 0
        %347 = vmatprep.subr.bf16.mxu0 0
        %348 = vmatpush2.bf16.msra.mxu0 0
        %349 = vmatprep.mubr.bf16.mxu0 0
        %350 = vmatmul.mubr.bf16.gmra.mxu0 %v305
        %v351 = vpop.f32.mrf.mxu0
        %v352 = vadd.f32 %v267, %v351
        %v353 = vpop.f32.mrf.mxu0
        %v354 = vadd.f32 %v267, %v353
        %v355 = vpop.f32.mrf.mxu0
        %v356 = vadd.f32 %v272, %v355
        %v357 = vpop.f32.mrf.mxu0
        %v358 = vadd.f32 %v272, %v357
        %359 = vmatprep.mubr.bf16.mxu0 0
        %360 = vmatmul.mubr.bf16.gmra.mxu0 %v308
        %v361 = vpop.f32.mrf.mxu0
        %v362 = vadd.f32 %v277, %v361
        %v363 = vpop.f32.mrf.mxu0
        %v364 = vadd.f32 %v277, %v363
        %v365 = vpop.f32.mrf.mxu0
        %v366 = vadd.f32 %v282, %v365
        %v367 = vpop.f32.mrf.mxu0
        %v368 = vadd.f32 %v282, %v367
        %369 = vdwg.mxu0
        %v370 = vmax.f32 %v352, 0.0
        %v371 = vmax.f32 %v354, 0.0
        %v372 = vmax.f32 %v356, 0.0
        %v373 = vmax.f32 %v358, 0.0
        %v374 = vmax.f32 %v362, 0.0
        %v375 = vmax.f32 %v364, 0.0
        %v376 = vmax.f32 %v366, 0.0
        %v377 = vmax.f32 %v368, 0.0
        %v378 = vld [vmem:[%s3] sm:$0x3]
        %v379 = vpack.c.bf16 %v372, %v370
        %v380 = vpack.c.bf16 %v373, %v371
        %v381 = vpack.c.bf16 %v376, %v374
        %v382 = vpack.c.bf16 %v377, %v375
        %v383 = vld [vmem:[%s4] sm:$0xf]
        %385 = vset.pattern.permute.xlu0 0
        %386 = vperm.xlu0 %385, %v383
        %v387 = vpop.permute.xlu0 %386
        %vm389 = vcmask 261120
        %v391 = vsel %vm389, %v378, 0
        %393 = vmatprep.subr.bf16.mxu0 0
        %394 = vmatpush1.bf16.msra.mxu0 0
        %395 = vmatprep.subr.bf16.mxu0 0
        %396 = vmatpush1.bf16.msra.mxu0 0
        %397 = vmatprep.subr.bf16.mxu0 0
        %398 = vmatpush1.bf16.msra.mxu0 0
        %399 = vmatprep.subr.bf16.mxu0 0
        %400 = vmatpush1.bf16.msra.mxu0 0
        %401 = vmatprep.subr.bf16.mxu0 0
        %402 = vmatpush1.bf16.msra.mxu0 0
        %403 = vmatprep.subr.bf16.mxu0 0
        %404 = vmatpush1.bf16.msra.mxu0 0
        %405 = vmatprep.subr.bf16.mxu0 %v382
        %406 = vmatpush1.bf16.msra.mxu0 %v381
        %407 = vmatprep.subr.bf16.mxu0 %v380
        %408 = vmatpush1.bf16.msra.mxu0 %v379
        %409 = vmatprep.subr.bf16.mxu0 0
        %410 = vmatpush2.bf16.msra.mxu0 0
        %411 = vmatprep.subr.bf16.mxu0 0
        %412 = vmatpush2.bf16.msra.mxu0 0
        %413 = vmatprep.subr.bf16.mxu0 0
        %414 = vmatpush2.bf16.msra.mxu0 0
        %415 = vmatprep.subr.bf16.mxu0 0
        %416 = vmatpush2.bf16.msra.mxu0 0
        %417 = vmatprep.subr.bf16.mxu0 0
        %418 = vmatpush2.bf16.msra.mxu0 0
        %419 = vmatprep.subr.bf16.mxu0 0
        %420 = vmatpush2.bf16.msra.mxu0 0
        %421 = vmatprep.subr.bf16.mxu0 0
        %422 = vmatpush2.bf16.msra.mxu0 0
        %423 = vmatprep.subr.bf16.mxu0 0
        %424 = vmatpush2.bf16.msra.mxu0 0
        %425 = vmatprep.mubr.bf16.mxu0 0
        %426 = vmatmul.mubr.bf16.gmra.mxu0 %v391
        %v427 = vpop.f32.mrf.mxu0
        %v428 = vadd.f32 %v387, %v427
        %v429 = vpop.f32.mrf.mxu0
        %v430 = vadd.f32 %v387, %v429
        %v431 = vpop.f32.mrf.mxu0
        %v432 = vpop.f32.mrf.mxu0
        %433 = vdwg.mxu0
        %v436 = vcombine.low %v428, %v430
        %438 = vst [vmem:[%s242] sm:$0xff] %v436
        %s439 = sand.u32 %s153, 1
        %s440 = scalar_lea.sflag [#allocation3], %s439
        %s441 = sand.u32 %s153, 1
        %s442 = smul.addr %s441, 8
        %s443 = scalar_lea.vmem [#allocation2], %s442
        // Predicated region
        $region41: #{tpu_custom_call.1} parent=39 // pred_check
          %p444 = pneg %p163
        $region42: #{tpu_custom_call.1} parent=39 // pred_check_branch
          %446 = sbr.rel (%p444) target = $region44
        $region43: #{tpu_custom_call.1} parent=39 // pred_region
          %s447 = smul.u32 2, %s24
          %s449 = ssub.s32 128, 128
          %450 = vsyncadd %s440, %s449
          %s451 = smul.addr %s23, 2
          %s452 = sadd.s32 %s447, %s451
          %s453 = smul.addr %s452, 64
          %s454 = scalar_lea.hbm %s5, %s453
          %s456 = sshll.u32 %s443, 4
          %s457 = int_to_ptr.vmem [resolvable:$true] %s456
          %459 = dma.vmem_to_hbm [thread:$0]  %s457, 128, %s454, %s440
        $region44: #{tpu_custom_call.1} parent=39 // pred_fallthru
          _
      $region40: #{tpu_custom_call.1} parent=5 // pred_fallthru
        _
      %p460 = scmp.le.s32.totalorder 2, %s14
      // Predicated region
      $region45: #{tpu_custom_call.1} parent=5 // pred_check
        %p461 = pneg %p460
      $region46: #{tpu_custom_call.1} parent=5 // pred_check_branch
        %463 = sbr.rel (%p461) target = $region48
      $region47: #{tpu_custom_call.1} parent=5 // pred_region
        %s464 = ssub.s32 %s14, 2
        // Predicated region
        $region49: #{tpu_custom_call.1} parent=47 // pred_check
          %p465 = pneg %p169
        $region50: #{tpu_custom_call.1} parent=47 // pred_check_branch
          %467 = sbr.rel (%p465) target = $region52
        $region51: #{tpu_custom_call.1} parent=47 // pred_region
          %s468 = sand.u32 %s154, 1
          %s469 = scalar_lea.sflag [#allocation3], %s468
          %s470 = sand.u32 %s154, 1
          %s471 = smul.addr %s470, 8
          %s472 = scalar_lea.vmem [#allocation2], %s471
          %473 = dma.done %s469, 128
        $region52: #{tpu_custom_call.1} parent=47 // pred_fallthru
          _
      $region48: #{tpu_custom_call.1} parent=5 // pred_fallthru
        _
    $region6: #{tpu_custom_call.1} parent=1 // loop_footer
      %s18 = sadd.s32 1, %s14
    $region7: #{tpu_custom_call.1} parent=1 // loop_footer_branch
      %13 = sbr.rel target = $region3
    $region8: #{tpu_custom_call.1} parent=1 // loop_exit
      _
    %474 = vsyncpa [#allocation3], 1
    %s475 = scalar_lea.sflag [#allocation3], 1
    %476 = vsyncpa %s475, 1

</llo_original>
